<compile_context>
chip_gen: v6e
topology: v6e:2x2x1
jax: 0.10.0
libtpu: 0.0.40
codegen_flags: <defaults>
</compile_context>

<pallas_src>
import functools

import jax
import jax.numpy as jnp
from jax.experimental import pallas as pl
from jax.experimental.pallas import tpu as pltpu

_LANE = 128
_SUBLANE = 8


def _round_up(v, m):
    return ((v + m - 1) // m) * m


def _vmem_capacity_bytes():
    try:
        return int(pltpu.get_tpu_info().vmem_capacity_bytes)
    except Exception:
        # Conservative fallback (v7x physical VMEM) so the limit is safe everywhere.
        return 64 * 1024 * 1024


def _divisor_tile(total, unit, max_units):
    """Largest multiple of `unit` dividing `total`, at most max_units*unit."""
    n = total // unit
    for d in range(min(n, max(1, max_units)), 0, -1):
        if n % d == 0:
            return d * unit
    return unit


def _lstm_cell_kernel(xh_ref, w_ref, b_ref, c_ref, h_out_ref, c_out_ref, *, tn):
    # Single MXU matmul on the concatenated [x | h_prev] tile against the fused,
    # gate-block-reordered weight block; bias is already b_ih + b_hh (f32).
    gates = jnp.dot(xh_ref[...], w_ref[...],
                    preferred_element_type=jnp.float32) + b_ref[...]

    # Gate columns inside this hidden tile are laid out [i | f | g | o], each
    # `tn` lanes wide (tn is a multiple of 128 -> lane-aligned slices).
    i_gate = jax.nn.sigmoid(gates[:, 0 * tn:1 * tn])
    f_gate = jax.nn.sigmoid(gates[:, 1 * tn:2 * tn])
    g_gate = jnp.tanh(gates[:, 2 * tn:3 * tn])
    o_gate = jax.nn.sigmoid(gates[:, 3 * tn:4 * tn])

    c_prev = c_ref[...].astype(jnp.float32)
    c_new = f_gate * c_prev + i_gate * g_gate
    h_new = o_gate * jnp.tanh(c_new)

    h_out_ref[...] = h_new.astype(h_out_ref.dtype)
    c_out_ref[...] = c_new.astype(c_out_ref.dtype)


def prepare_lstm_params(params, *, block_h=2048, matmul_dtype=jnp.bfloat16):
    """One-time weight preparation (call outside any per-timestep loop).

    params: dict with w_ih [4H, I], w_hh [4H, H], b_ih [4H], b_hh [4H]
            (PyTorch Linear layout, y = x @ W.T + b).

    Produces a single fused weight [Ip + Hp, 4*Hp] (Hp = H padded to 128 lanes,
    Ip = I padded to 8 sublanes) whose columns are reordered hidden-block-major:
    for hidden tile j the columns are [i_j | f_j | g_j | o_j], each `tn` wide, so
    a (K, 4*tn) block serves exactly one output tile.  Biases are pre-summed into
    one f32 [1, 4*Hp].  The weight is cast to `matmul_dtype` (bf16 by default).
    """
    w_ih, w_hh = params["w_ih"], params["w_hh"]
    bias_sum = params["b_ih"].astype(jnp.float32) + params["b_hh"].astype(jnp.float32)

    four_h, input_size = w_ih.shape
    hidden = w_hh.shape[1]
    assert four_h == 4 * hidden

    hp = _round_up(hidden, _LANE)
    ip = _round_up(input_size, _SUBLANE)
    k_dim = ip + hp
    dtype = matmul_dtype if matmul_dtype is not None else w_ih.dtype
    itemsize = jnp.dtype(dtype).itemsize

    # VMEM-budget-aware hidden tile: the (K, 4*tn) weight block is double-buffered.
    vmem_limit = int(0.75 * _vmem_capacity_bytes())
    weight_budget = int(0.6 * vmem_limit)
    max_units = max(1, block_h // _LANE)
    n = hp // _LANE
    tn = _LANE
    for d in range(min(n, max_units), 0, -1):
        if n % d:
            continue
        cand = d * _LANE
        if 2 * k_dim * 4 * cand * itemsize <= weight_budget:
            tn = cand
            break
    nj = hp // tn

    # [4H, in] -> [4, H, in], pad hidden rows to Hp, input cols to Ip / Hp,
    # then stack the input-feature axes so xh = [x_pad | h_prev_pad] hits both.
    w_ih4 = jnp.pad(w_ih.reshape(4, hidden, input_size),
                    ((0, 0), (0, hp - hidden), (0, ip - input_size)))
    w_hh4 = jnp.pad(w_hh.reshape(4, hidden, hidden),
                    ((0, 0), (0, hp - hidden), (0, hp - hidden)))
    w4 = jnp.concatenate([w_ih4, w_hh4], axis=-1)            # [4, Hp, K]

    # [4, Hp, K] -> [4, nj, tn, K] -> [K, nj, 4, tn] -> [K, 4*Hp] (block-major).
    w4 = w4.reshape(4, nj, tn, k_dim)
    w_fused = jnp.transpose(w4, (3, 1, 0, 2)).reshape(k_dim, 4 * hp).astype(dtype)

    b4 = jnp.pad(bias_sum.reshape(4, hidden), ((0, 0), (0, hp - hidden)))
    b4 = b4.reshape(4, nj, tn)
    bias = jnp.transpose(b4, (1, 0, 2)).reshape(1, 4 * hp).astype(jnp.float32)

    return {
        "w": w_fused,             # [Ip + Hp, 4*Hp], matmul_dtype (bf16 default)
        "b": bias,                # [1, 4*Hp], f32
        "input_size": input_size,
        "input_padded": ip,
        "hidden_size": hidden,
        "hidden_padded": hp,
        "block_h": tn,
        "vmem_limit": vmem_limit,
    }


def lstm_cell_forward(x, state, prepared, *, block_b=128):
    """Runs one LSTMCell step.

    x:        [B, input_size]
    state:    optional (h_prev, c_prev), each [B, hidden_size]; zeros if None.
    prepared: output of prepare_lstm_params (built once, reused per step).
    Returns (h, c), each [B, hidden_size].
    """
    w, b = prepared["w"], prepared["b"]
    in_size = prepared["input_size"]
    ip = prepared["input_padded"]
    hidden = prepared["hidden_size"]
    hp = prepared["hidden_padded"]
    tn = prepared["block_h"]
    vmem_limit = prepared["vmem_limit"]

    batch = x.shape[0]
    dtype = x.dtype

    if state is None:
        h_prev = jnp.zeros((batch, hidden), dtype=dtype)
        c_prev = jnp.zeros((batch, hidden), dtype=dtype)
    else:
        h_prev, c_prev = state

    mm_dtype = w.dtype
    mm_item = jnp.dtype(mm_dtype).itemsize
    out_item = jnp.dtype(dtype).itemsize
    k_dim = ip + hp

    # Keep the whole (padded) batch in one tile whenever the VMEM budget allows;
    # batch splitting only multiplies grid steps (weight block is reused anyway).
    bp = _round_up(batch, _SUBLANE)
    w_bytes = 2 * k_dim * 4 * tn * mm_item + 2 * 4 * tn * 4
    per_row = 2 * k_dim * mm_item + 2 * tn * out_item + 2 * 2 * tn * out_item
    budget_rows = max(_SUBLANE, (int(0.9 * vmem_limit) - w_bytes) // max(1, per_row))
    max_units = max(1, min(block_b, budget_rows) // _SUBLANE)
    tb = _divisor_tile(bp, _SUBLANE, max_units)

    x_p = jnp.pad(x, ((0, bp - batch), (0, ip - in_size))).astype(mm_dtype)
    h_p = jnp.pad(h_prev, ((0, bp - batch), (0, hp - hidden))).astype(mm_dtype)
    xh = jnp.concatenate([x_p, h_p], axis=-1)                 # [Bp, K]
    c_p = jnp.pad(c_prev, ((0, bp - batch), (0, hp - hidden))).astype(dtype)

    # Hidden tiles OUTER (megacore-parallel), batch tiles INNER (weight reuse).
    grid = (hp // tn, bp // tb)

    kernel = functools.partial(_lstm_cell_kernel, tn=tn)
    h_out, c_out = pl.pallas_call(
        kernel,
        out_shape=(
            jax.ShapeDtypeStruct((bp, hp), dtype),
            jax.ShapeDtypeStruct((bp, hp), dtype),
        ),
        grid=grid,
        in_specs=[
            pl.BlockSpec((tb, k_dim), lambda j, i: (i, 0)),      # [x | h] rows
            pl.BlockSpec((k_dim, 4 * tn), lambda j, i: (0, j)),  # fused weights
            pl.BlockSpec((1, 4 * tn), lambda j, i: (0, j)),      # fused bias
            pl.BlockSpec((tb, tn), lambda j, i: (i, j)),         # c_prev tile
        ],
        out_specs=(
            pl.BlockSpec((tb, tn), lambda j, i: (i, j)),         # h tile
            pl.BlockSpec((tb, tn), lambda j, i: (i, j)),         # c tile
        ),
        input_output_aliases={3: 1},   # c_prev (padded) buffer reused for c_out
        compiler_params=pltpu.CompilerParams(
            dimension_semantics=("parallel", "arbitrary"),
            vmem_limit_bytes=vmem_limit,
        ),
    )(xh, w, b, c_p)

    return h_out[:batch, :hidden], c_out[:batch, :hidden]


def init_lstm_params(key, input_size, hidden_size, bias=True, dtype=jnp.float32):
    # Deterministic init mimicking PyTorch Linear default: U(-k, k), k = 1/sqrt(fan_in).
    k_ih, k_hh, k_bih, k_bhh = jax.random.split(key, 4)
    bound_ih = 1.0 / (input_size ** 0.5)
    bound_hh = 1.0 / (hidden_size ** 0.5)
    params = {
        "w_ih": jax.random.uniform(k_ih, (4 * hidden_size, input_size),
                                   dtype=dtype, minval=-bound_ih, maxval=bound_ih),
        "w_hh": jax.random.uniform(k_hh, (4 * hidden_size, hidden_size),
                                   dtype=dtype, minval=-bound_hh, maxval=bound_hh),
    }
    if bias:
        params["b_ih"] = jax.random.uniform(k_bih, (4 * hidden_size,),
                                            dtype=dtype, minval=-bound_ih, maxval=bound_ih)
        params["b_hh"] = jax.random.uniform(k_bhh, (4 * hidden_size,),
                                            dtype=dtype, minval=-bound_hh, maxval=bound_hh)
    else:
        params["b_ih"] = jnp.zeros((4 * hidden_size,), dtype=dtype)
        params["b_hh"] = jnp.zeros((4 * hidden_size,), dtype=dtype)
    return params


def _reference_lstm_cell(x, state, params):
    # Pure-JAX reference mirroring the PyTorch module exactly.
    hidden_size = params["w_hh"].shape[1]
    if state is None:
        zeros = jnp.zeros((x.shape[0], hidden_size), dtype=x.dtype)
        h_prev, c_prev = zeros, zeros
    else:
        h_prev, c_prev = state
    pred_i = x @ params["w_ih"].T + params["b_ih"]
    pred_h = h_prev @ params["w_hh"].T + params["b_hh"]
    ii, if_, ig, io = jnp.split(pred_i, 4, axis=-1)
    hi, hf, hg, ho = jnp.split(pred_h, 4, axis=-1)
    i = jax.nn.sigmoid(ii + hi)
    f = jax.nn.sigmoid(if_ + hf)
    g = jnp.tanh(ig + hg)
    o = jax.nn.sigmoid(io + ho)
    c = f * c_prev + i * g
    h = o * jnp.tanh(c)
    return h, c


if __name__ == "__main__":
    key = jax.random.PRNGKey(0)

    # --- Case A: small module-typical shapes (single tile after padding). ---
    input_size, hidden_size, batch = 16, 32, 2
    k_params, k_x, k_h, k_c, k_rest = jax.random.split(key, 5)

    params = init_lstm_params(k_params, input_size, hidden_size, bias=True)

    x = jax.random.normal(k_x, (batch, input_size), dtype=jnp.float32)
    h0 = jax.random.normal(k_h, (batch, hidden_size), dtype=jnp.float32)
    c0 = jax.random.normal(k_c, (batch, hidden_size), dtype=jnp.float32)
    h_ref, c_ref = _reference_lstm_cell(x, (h0, c0), params)

    # A1: f32-weight mode for a tight correctness check.
    prepared_f32 = prepare_lstm_params(params, matmul_dtype=jnp.float32)
    h, c = lstm_cell_forward(x, (h0, c0), prepared_f32)
    jax.block_until_ready((h, c))
    assert h.shape == (batch, hidden_size) and c.shape == (batch, hidden_size)
    assert jnp.allclose(h, h_ref, atol=1e-4, rtol=1e-4), "h mismatch (f32)"
    assert jnp.allclose(c, c_ref, atol=1e-4, rtol=1e-4), "c mismatch (f32)"

    # A2: default (bf16-weight) fast path, looser tolerance.
    prepared = prepare_lstm_params(params)          # bf16 weights by default
    hb, cb = lstm_cell_forward(x, (h0, c0), prepared)
    jax.block_until_ready((hb, cb))
    assert jnp.allclose(hb, h_ref, atol=3e-2, rtol=3e-2), "h mismatch (bf16)"
    assert jnp.allclose(cb, c_ref, atol=3e-2, rtol=3e-2), "c mismatch (bf16)"

    # A3: zero-state path.
    h2, c2 = lstm_cell_forward(x, None, prepared)
    jax.block_until_ready((h2, c2))
    h2_ref, c2_ref = _reference_lstm_cell(x, None, params)
    assert jnp.allclose(h2, h2_ref, atol=3e-2, rtol=3e-2), "h (zero-state) mismatch"
    assert jnp.allclose(c2, c2_ref, atol=3e-2, rtol=3e-2), "c (zero-state) mismatch"

    # --- Case B: shapes exercising the reordered (hidden-outer, batch-inner) grid. ---
    in2, hid2, b2 = 20, 512, 16
    k_p2, k_x2, k_h2, k_c2 = jax.random.split(k_rest, 4)
    params2 = init_lstm_params(k_p2, in2, hid2, bias=True)
    # block_h=256 -> 2 hidden tiles; block_b=8 only to exercise batch tiling in the
    # test (production default keeps the full batch in one tile).
    prepared2 = prepare_lstm_params(params2, block_h=256)

    x2 = jax.random.normal(k_x2, (b2, in2), dtype=jnp.float32)
    h02 = jax.random.normal(k_h2, (b2, hid2), dtype=jnp.float32)
    c02 = jax.random.normal(k_c2, (b2, hid2), dtype=jnp.float32)

    h3, c3 = lstm_cell_forward(x2, (h02, c02), prepared2, block_b=8)  # grid (2, 2)
    jax.block_until_ready((h3, c3))
    h3_ref, c3_ref = _reference_lstm_cell(x2, (h02, c02), params2)
    assert jnp.allclose(h3, h3_ref, atol=3e-2, rtol=3e-2), "h (tiled) mismatch"
    assert jnp.allclose(c3, c3_ref, atol=3e-2, rtol=3e-2), "c (tiled) mismatch"

    print("KERNEL_OK")
</pallas_src>

<mosaic_0001>
module attributes {stable_mosaic.version = 11 : i64} {
  func.func @_lstm_cell_kernel(%arg0: i32, %arg1: i32, %arg2: memref<8x144xf32, #tpu.memory_space<vmem>>, %arg3: memref<144x512xf32, #tpu.memory_space<vmem>>, %arg4: memref<1x512xf32, #tpu.memory_space<vmem>>, %arg5: memref<8x128xf32, #tpu.memory_space<vmem>>, %arg6: memref<8x128xf32, #tpu.memory_space<vmem>>, %arg7: memref<8x128xf32, #tpu.memory_space<vmem>>) attributes {dimension_semantics = [#tpu.dimension_semantics<parallel>, #tpu.dimension_semantics<arbitrary>], iteration_bounds = array<i64: 1, 1>, scalar_prefetch = 0 : i64, scratch_operands = 0 : i64, tpu.core_type = #tpu.core_type<tc>, window_params = [{transform_indices = @transform_0, window_bounds = array<i64: 8, 144>}, {transform_indices = @transform_1, window_bounds = array<i64: 144, 512>}, {transform_indices = @transform_2, window_bounds = array<i64: 1, 512>}, {transform_indices = @transform_3, window_bounds = array<i64: 8, 128>}, {transform_indices = @transform_4, window_bounds = array<i64: 8, 128>}, {transform_indices = @transform_5, window_bounds = array<i64: 8, 128>}]} {
    %c0 = arith.constant 0 : index
    %c0_0 = arith.constant 0 : index
    %0 = vector.load %arg2[%c0, %c0_0] : memref<8x144xf32, #tpu.memory_space<vmem>>, vector<8x144xf32>
    %c0_1 = arith.constant 0 : index
    %c0_2 = arith.constant 0 : index
    %1 = vector.load %arg3[%c0_1, %c0_2] : memref<144x512xf32, #tpu.memory_space<vmem>>, vector<144x512xf32>
    %cst = arith.constant dense<0.000000e+00> : vector<8x512xf32>
    %2 = tpu.matmul %0, %1, %cst {dimension_numbers = #tpu.dot_dimension_numbers<[1], [0], [0], [1], [0, 0, 1, 1], [], []>} : vector<8x144xf32>, vector<144x512xf32>, vector<8x512xf32> -> vector<8x512xf32>
    %c0_3 = arith.constant 0 : index
    %c0_4 = arith.constant 0 : index
    %3 = vector.load %arg4[%c0_3, %c0_4] : memref<1x512xf32, #tpu.memory_space<vmem>>, vector<1x512xf32>
    %4 = vector.broadcast %3 : vector<1x512xf32> to vector<8x512xf32>
    %5 = arith.addf %2, %4 : vector<8x512xf32>
    %6 = vector.extract_strided_slice %5 {offsets = [0, 0], sizes = [8, 128], strides = [1, 1]} : vector<8x512xf32> to vector<8x128xf32>
    %7 = arith.negf %6 : vector<8x128xf32>
    %8 = math.exp %7 : vector<8x128xf32>
    %cst_5 = arith.constant 1.000000e+00 : f32
    %9 = vector.broadcast %cst_5 : f32 to vector<8x128xf32>
    %10 = arith.addf %9, %8 : vector<8x128xf32>
    %11 = arith.divf %9, %10 : vector<8x128xf32>
    %12 = vector.extract_strided_slice %5 {offsets = [0, 128], sizes = [8, 128], strides = [1, 1]} : vector<8x512xf32> to vector<8x128xf32>
    %13 = arith.negf %12 : vector<8x128xf32>
    %14 = math.exp %13 : vector<8x128xf32>
    %cst_6 = arith.constant 1.000000e+00 : f32
    %15 = vector.broadcast %cst_6 : f32 to vector<8x128xf32>
    %16 = arith.addf %15, %14 : vector<8x128xf32>
    %17 = arith.divf %15, %16 : vector<8x128xf32>
    %18 = vector.extract_strided_slice %5 {offsets = [0, 256], sizes = [8, 128], strides = [1, 1]} : vector<8x512xf32> to vector<8x128xf32>
    %19 = math.tanh %18 : vector<8x128xf32>
    %20 = vector.extract_strided_slice %5 {offsets = [0, 384], sizes = [8, 128], strides = [1, 1]} : vector<8x512xf32> to vector<8x128xf32>
    %21 = arith.negf %20 : vector<8x128xf32>
    %22 = math.exp %21 : vector<8x128xf32>
    %cst_7 = arith.constant 1.000000e+00 : f32
    %23 = vector.broadcast %cst_7 : f32 to vector<8x128xf32>
    %24 = arith.addf %23, %22 : vector<8x128xf32>
    %25 = arith.divf %23, %24 : vector<8x128xf32>
    %c0_8 = arith.constant 0 : index
    %c0_9 = arith.constant 0 : index
    %26 = vector.load %arg5[%c0_8, %c0_9] : memref<8x128xf32, #tpu.memory_space<vmem>>, vector<8x128xf32>
    %27 = arith.mulf %17, %26 : vector<8x128xf32>
    %28 = arith.mulf %11, %19 : vector<8x128xf32>
    %29 = arith.addf %27, %28 : vector<8x128xf32>
    %30 = math.tanh %29 : vector<8x128xf32>
    %31 = arith.mulf %25, %30 : vector<8x128xf32>
    %c0_10 = arith.constant 0 : index
    %c0_11 = arith.constant 0 : index
    %32 = vector.load %arg6[%c0_10, %c0_11] : memref<8x128xf32, #tpu.memory_space<vmem>>, vector<8x128xf32>
    tpu.vector_store %arg6[%c0_10, %c0_11], %31 {strides = array<i32>} : memref<8x128xf32, #tpu.memory_space<vmem>>, vector<8x128xf32>,
    %c0_12 = arith.constant 0 : index
    %c0_13 = arith.constant 0 : index
    %33 = vector.load %arg7[%c0_12, %c0_13] : memref<8x128xf32, #tpu.memory_space<vmem>>, vector<8x128xf32>
    tpu.vector_store %arg7[%c0_12, %c0_13], %29 {strides = array<i32>} : memref<8x128xf32, #tpu.memory_space<vmem>>, vector<8x128xf32>,
    return
  }
  func.func @transform_0(%arg0: i32, %arg1: i32) -> (i32, i32) {
    %c0_i32 = arith.constant 0 : i32
    %c0_i32_0 = arith.constant 0 : i32
    return %arg1, %c0_i32 : i32, i32
  }
  func.func @transform_1(%arg0: i32, %arg1: i32) -> (i32, i32) {
    %c0_i32 = arith.constant 0 : i32
    %c0_i32_0 = arith.constant 0 : i32
    return %c0_i32, %arg0 : i32, i32
  }
  func.func @transform_2(%arg0: i32, %arg1: i32) -> (i32, i32) {
    %c0_i32 = arith.constant 0 : i32
    %c0_i32_0 = arith.constant 0 : i32
    return %c0_i32, %arg0 : i32, i32
  }
  func.func @transform_3(%arg0: i32, %arg1: i32) -> (i32, i32) {
    %c0_i32 = arith.constant 0 : i32
    return %arg1, %arg0 : i32, i32
  }
  func.func @transform_4(%arg0: i32, %arg1: i32) -> (i32, i32) {
    %c0_i32 = arith.constant 0 : i32
    return %arg1, %arg0 : i32, i32
  }
  func.func @transform_5(%arg0: i32, %arg1: i32) -> (i32, i32) {
    %c0_i32 = arith.constant 0 : i32
    return %arg1, %arg0 : i32, i32
  }
}

</mosaic_0001>

<llo_original>
// kernel: tpu_custom_call.1
$region0: #{tpu_custom_call.1}
  #allocation0 [shape = 'u32[]', space=smem, size = 0x4, offset = 0x4, fixed_abs, tag = 'smem constant byte address 0x4 - core index']
  #allocation1 [shape = 'u32[144,128]{1,0:T(1,128)}', space=vmem, size = 0x12000, scoped, tag = 'internal scratch']
  %s0 = inlined_call_operand.vmem [shape: f32[8,144], index: 0, kind: input, shape index: {}]
  %s1 = inlined_call_operand.hbm [shape: f32[144,512], index: 1, kind: input, shape index: {}]
  %s2 = inlined_call_operand.vmem [shape: f32[1,512], index: 2, kind: input, shape index: {}]
  %s3 = inlined_call_operand.hbm [shape: f32[8,128], index: 3, kind: input, shape index: {}, may-alias: {3,5}]
  %s4 = inlined_call_operand.hbm [shape: f32[8,128], index: 4, kind: output, shape index: {0}]
  %s5 = inlined_call_operand.hbm [shape: f32[8,128], index: 5, kind: output, shape index: {1}, may-alias: {3,5}]
  %6 = xla_tuple %s4, %s5
  %s7 = sld [smem:[#allocation0]]
  $region42: #{tpu_custom_call.1} parent=0
    _
  %s9 = ssub.s32 1, %s7
  %s10 = scalar_select 0, %s9, %s7
  $region1: #{tpu_custom_call.1} parent=0
    #allocation2 [shape = 'u8[294912]{0}', space=vmem, size = 0x48000, scoped, tag = 'input window, operand 1, single buffered']
    #allocation3 [shape = 's32[1]{0}', space=sflag, size = 0x4, scoped, tag = 'scoped memory for tpu_custom_call.1']
    #allocation4 [shape = 's32[1]{0}', space=sflag, size = 0x4, scoped, tag = 'scoped memory for tpu_custom_call.1']
    #allocation5 [shape = 'u8[4096]{0}', space=vmem, size = 0x1000, scoped, tag = 'input window, operand 3, single buffered']
    #allocation6 [shape = 's32[1]{0}', space=sflag, size = 0x4, scoped, tag = 'scoped memory for tpu_custom_call.1']
    #allocation7 [shape = 'u8[4096]{0}', space=vmem, size = 0x1000, scoped, tag = 'output window, operand 0, single buffered']
    #allocation8 [shape = 'u8[4096]{0}', space=vmem, size = 0x1000, scoped, tag = 'output window, operand 1, single buffered']
    #allocation9 [shape = 's32[1]{0}', space=sflag, size = 0x4, scoped, tag = 'scoped memory for tpu_custom_call.1']
    %11 = vsyncpa [#allocation3], 0
    %12 = vsyncpa [#allocation6], 0
    %13 = vsyncpa [#allocation4], 0
    %14 = vsyncpa [#allocation9], 0
    // Predicated region
    $region2: #{tpu_custom_call.1} parent=1 // pred_check
      _
    $region3: #{tpu_custom_call.1} parent=1 // pred_check_branch
      %16 = sbr.rel (0) target = $region5
    $region4: #{tpu_custom_call.1} parent=1 // pred_region
      _
    $region5: #{tpu_custom_call.1} parent=1 // pred_fallthru
      _
    // Predicated region
    $region6: #{tpu_custom_call.1} parent=1 // pred_check
      _
    $region7: #{tpu_custom_call.1} parent=1 // pred_check_branch
      %18 = sbr.rel (0) target = $region9
    $region8: #{tpu_custom_call.1} parent=1 // pred_region
      %s20 = ssub.s32 9216, 9216
      %21 = vsyncadd [#allocation3], %s20
      %s22 = sshll.u32 [#allocation2], 4
      %s23 = int_to_ptr.vmem [resolvable:$true] %s22
      %28 = dma.hbm_to_vmem [thread:$0]  %s1, 9216, %s23, [#allocation3], 512, 512, 32
    $region9: #{tpu_custom_call.1} parent=1 // pred_fallthru
      _
    // Predicated region
    $region10: #{tpu_custom_call.1} parent=1 // pred_check
      _
    $region11: #{tpu_custom_call.1} parent=1 // pred_check_branch
      %30 = sbr.rel (0) target = $region13
    $region12: #{tpu_custom_call.1} parent=1 // pred_region
      _
    $region13: #{tpu_custom_call.1} parent=1 // pred_fallthru
      _
    // Predicated region
    $region14: #{tpu_custom_call.1} parent=1 // pred_check
      _
    $region15: #{tpu_custom_call.1} parent=1 // pred_check_branch
      %32 = sbr.rel (0) target = $region17
    $region16: #{tpu_custom_call.1} parent=1 // pred_region
      %s34 = ssub.s32 128, 128
      %35 = vsyncadd [#allocation6], %s34
      %s37 = sshll.u32 [#allocation5], 4
      %s38 = int_to_ptr.vmem [resolvable:$true] %s37
      %40 = dma.hbm_to_vmem [thread:$0]  %s3, 128, %s38, [#allocation6]
    $region17: #{tpu_custom_call.1} parent=1 // pred_fallthru
      _
    // Predicated region
    $region18: #{tpu_custom_call.1} parent=1 // pred_check
      _
    $region19: #{tpu_custom_call.1} parent=1 // pred_check_branch
      %42 = sbr.rel (0) target = $region21
    $region20: #{tpu_custom_call.1} parent=1 // pred_region
      %43 = dma.done [#allocation3], 9216
    $region21: #{tpu_custom_call.1} parent=1 // pred_fallthru
      _
    // Predicated region
    $region22: #{tpu_custom_call.1} parent=1 // pred_check
      _
    $region23: #{tpu_custom_call.1} parent=1 // pred_check_branch
      %45 = sbr.rel (0) target = $region25
    $region24: #{tpu_custom_call.1} parent=1 // pred_region
      %46 = dma.done [#allocation6], 128
    $region25: #{tpu_custom_call.1} parent=1 // pred_fallthru
      _
    %v47 = vld [vmem:[%s0] sm:$0xff]
    %v48 = vld [vmem:[%s0 + $0x8] sm:$0xff]
    %v49 = vld [vmem:[#allocation2] sm:$0xff]
    %v50 = vld [vmem:[#allocation2 + $0x8] sm:$0xff]
    %v51 = vld [vmem:[#allocation2 + $0x10] sm:$0xff]
    %v52 = vld [vmem:[#allocation2 + $0x18] sm:$0xff]
    %v53 = vld [vmem:[#allocation2 + $0x20] sm:$0xff]
    %v54 = vld [vmem:[#allocation2 + $0x28] sm:$0xff]
    %v55 = vld [vmem:[#allocation2 + $0x30] sm:$0xff]
    %v56 = vld [vmem:[#allocation2 + $0x38] sm:$0xff]
    %v57 = vld [vmem:[#allocation2 + $0x40] sm:$0xff]
    %v58 = vld [vmem:[#allocation2 + $0x48] sm:$0xff]
    %v59 = vld [vmem:[#allocation2 + $0x50] sm:$0xff]
    %v60 = vld [vmem:[#allocation2 + $0x58] sm:$0xff]
    %v61 = vld [vmem:[#allocation2 + $0x60] sm:$0xff]
    %v62 = vld [vmem:[#allocation2 + $0x68] sm:$0xff]
    %v63 = vld [vmem:[#allocation2 + $0x70] sm:$0xff]
    %v64 = vld [vmem:[#allocation2 + $0x78] sm:$0xff]
    %v65 = vld [vmem:[#allocation2 + $0x80] sm:$0xff]
    %v66 = vld [vmem:[#allocation2 + $0x88] sm:$0xff]
    %v67 = vld [vmem:[#allocation2 + $0x90] sm:$0xff]
    %v68 = vld [vmem:[#allocation2 + $0x98] sm:$0xff]
    %v69 = vld [vmem:[#allocation2 + $0xa0] sm:$0xff]
    %v70 = vld [vmem:[#allocation2 + $0xa8] sm:$0xff]
    %v71 = vld [vmem:[#allocation2 + $0xb0] sm:$0xff]
    %v72 = vld [vmem:[#allocation2 + $0xb8] sm:$0xff]
    %v73 = vld [vmem:[#allocation2 + $0xc0] sm:$0xff]
    %v74 = vld [vmem:[#allocation2 + $0xc8] sm:$0xff]
    %v75 = vld [vmem:[#allocation2 + $0xd0] sm:$0xff]
    %v76 = vld [vmem:[#allocation2 + $0xd8] sm:$0xff]
    %v77 = vld [vmem:[#allocation2 + $0xe0] sm:$0xff]
    %v78 = vld [vmem:[#allocation2 + $0xe8] sm:$0xff]
    %v79 = vld [vmem:[#allocation2 + $0xf0] sm:$0xff]
    %v80 = vld [vmem:[#allocation2 + $0xf8] sm:$0xff]
    %v81 = vld [vmem:[#allocation2 + $0x100] sm:$0xff]
    %v82 = vld [vmem:[#allocation2 + $0x108] sm:$0xff]
    %v83 = vld [vmem:[#allocation2 + $0x110] sm:$0xff]
    %v84 = vld [vmem:[#allocation2 + $0x118] sm:$0xff]
    %v85 = vld [vmem:[#allocation2 + $0x120] sm:$0xff]
    %v86 = vld [vmem:[#allocation2 + $0x128] sm:$0xff]
    %v87 = vld [vmem:[#allocation2 + $0x130] sm:$0xff]
    %v88 = vld [vmem:[#allocation2 + $0x138] sm:$0xff]
    %v89 = vld [vmem:[#allocation2 + $0x140] sm:$0xff]
    %v90 = vld [vmem:[#allocation2 + $0x148] sm:$0xff]
    %v91 = vld [vmem:[#allocation2 + $0x150] sm:$0xff]
    %v92 = vld [vmem:[#allocation2 + $0x158] sm:$0xff]
    %v93 = vld [vmem:[#allocation2 + $0x160] sm:$0xff]
    %v94 = vld [vmem:[#allocation2 + $0x168] sm:$0xff]
    %v95 = vld [vmem:[#allocation2 + $0x170] sm:$0xff]
    %v96 = vld [vmem:[#allocation2 + $0x178] sm:$0xff]
    %v97 = vld [vmem:[#allocation2 + $0x180] sm:$0xff]
    %v98 = vld [vmem:[#allocation2 + $0x188] sm:$0xff]
    %v99 = vld [vmem:[#allocation2 + $0x190] sm:$0xff]
    %v100 = vld [vmem:[#allocation2 + $0x198] sm:$0xff]
    %v101 = vld [vmem:[#allocation2 + $0x1a0] sm:$0xff]
    %v102 = vld [vmem:[#allocation2 + $0x1a8] sm:$0xff]
    %v103 = vld [vmem:[#allocation2 + $0x1b0] sm:$0xff]
    %v104 = vld [vmem:[#allocation2 + $0x1b8] sm:$0xff]
    %v105 = vld [vmem:[#allocation2 + $0x1c0] sm:$0xff]
    %v106 = vld [vmem:[#allocation2 + $0x1c8] sm:$0xff]
    %v107 = vld [vmem:[#allocation2 + $0x1d0] sm:$0xff]
    %v108 = vld [vmem:[#allocation2 + $0x1d8] sm:$0xff]
    %v109 = vld [vmem:[#allocation2 + $0x1e0] sm:$0xff]
    %v110 = vld [vmem:[#allocation2 + $0x1e8] sm:$0xff]
    %v111 = vld [vmem:[#allocation2 + $0x1f0] sm:$0xff]
    %v112 = vld [vmem:[#allocation2 + $0x1f8] sm:$0xff]
    %v113 = vld [vmem:[#allocation2 + $0x200] sm:$0xff]
    %v114 = vld [vmem:[#allocation2 + $0x208] sm:$0xff]
    %v115 = vld [vmem:[#allocation2 + $0x210] sm:$0xff]
    %v116 = vld [vmem:[#allocation2 + $0x218] sm:$0xff]
    %v117 = vld [vmem:[#allocation2 + $0x220] sm:$0xff]
    %v118 = vld [vmem:[#allocation2 + $0x228] sm:$0xff]
    %v119 = vld [vmem:[#allocation2 + $0x230] sm:$0xff]
    %v120 = vld [vmem:[#allocation2 + $0x238] sm:$0xff]
    %v121 = vld [vmem:[%s2] sm:$0xf]
    %v123 = vlaneseq
    %v124 = vshrl.u32 %v123, 7
    %v125 = vsub.s32 0, %v124
    %v126 = vrot.slane %v121, %v125
    %v127 = vlaneseq
    %v128 = vshrl.u32 %v127, 7
    %v129 = vsub.s32 1, %v128
    %v130 = vrot.slane %v121, %v129
    %v131 = vlaneseq
    %v132 = vshrl.u32 %v131, 7
    %v133 = vsub.s32 2, %v132
    %v134 = vrot.slane %v121, %v133
    %v135 = vlaneseq
    %v136 = vshrl.u32 %v135, 7
    %v137 = vsub.s32 3, %v136
    %v138 = vrot.slane %v121, %v137
    %vm143 = vcmask 130048
    %v145 = vsel %vm143, %v48, 0
    %147 = vmatprep.subr.mxu0 %v110
    %148 = vmatpush1.msra.mxu0 %v109
    %149 = vmatprep.subr.mxu0 %v106
    %150 = vmatpush1.msra.mxu0 %v105
    %151 = vmatprep.subr.mxu0 %v102
    %152 = vmatpush1.msra.mxu0 %v101
    %153 = vmatprep.subr.mxu0 %v98
    %154 = vmatpush1.msra.mxu0 %v97
    %155 = vmatprep.subr.mxu0 %v94
    %156 = vmatpush1.msra.mxu0 %v93
    %157 = vmatprep.subr.mxu0 %v90
    %158 = vmatpush1.msra.mxu0 %v89
    %159 = vmatprep.subr.mxu0 %v86
    %160 = vmatpush1.msra.mxu0 %v85
    %161 = vmatprep.subr.mxu0 %v82
    %162 = vmatpush1.msra.mxu0 %v81
    %163 = vmatprep.subr.mxu0 %v78
    %164 = vmatpush1.msra.mxu0 %v77
    %165 = vmatprep.subr.mxu0 %v74
    %166 = vmatpush1.msra.mxu0 %v73
    %167 = vmatprep.subr.mxu0 %v70
    %168 = vmatpush1.msra.mxu0 %v69
    %169 = vmatprep.subr.mxu0 %v66
    %170 = vmatpush1.msra.mxu0 %v65
    %171 = vmatprep.subr.mxu0 %v62
    %172 = vmatpush1.msra.mxu0 %v61
    %173 = vmatprep.subr.mxu0 %v58
    %174 = vmatpush1.msra.mxu0 %v57
    %175 = vmatprep.subr.mxu0 %v54
    %176 = vmatpush1.msra.mxu0 %v53
    %177 = vmatprep.subr.mxu0 %v50
    %178 = vmatpush1.msra.mxu0 %v49
    %179 = vmatprep.subr.mxu0 0.0
    %180 = vmatpush2.msra.mxu0 0.0
    %181 = vmatprep.subr.mxu0 0.0
    %182 = vmatpush2.msra.mxu0 0.0
    %183 = vmatprep.subr.mxu0 0.0
    %184 = vmatpush2.msra.mxu0 0.0
    %185 = vmatprep.subr.mxu0 0.0
    %186 = vmatpush2.msra.mxu0 0.0
    %187 = vmatprep.subr.mxu0 0.0
    %188 = vmatpush2.msra.mxu0 0.0
    %189 = vmatprep.subr.mxu0 0.0
    %190 = vmatpush2.msra.mxu0 0.0
    %191 = vmatprep.subr.mxu0 0.0
    %192 = vmatpush2.msra.mxu0 0.0
    %193 = vmatprep.subr.mxu0 0.0
    %194 = vmatpush2.msra.mxu0 0.0
    %195 = vmatprep.subr.mxu0 0.0
    %196 = vmatpush2.msra.mxu0 0.0
    %197 = vmatprep.subr.mxu0 0.0
    %198 = vmatpush2.msra.mxu0 0.0
    %199 = vmatprep.subr.mxu0 0.0
    %200 = vmatpush2.msra.mxu0 0.0
    %201 = vmatprep.subr.mxu0 0.0
    %202 = vmatpush2.msra.mxu0 0.0
    %203 = vmatprep.subr.mxu0 0.0
    %204 = vmatpush2.msra.mxu0 0.0
    %205 = vmatprep.subr.mxu0 0.0
    %206 = vmatpush2.msra.mxu0 0.0
    %207 = vmatprep.subr.mxu0 %v118
    %208 = vmatpush2.msra.mxu0 %v117
    %209 = vmatprep.subr.mxu0 %v114
    %210 = vmatpush2.msra.mxu0 %v113
    %211 = vmatprep.mubr.f32.mxu0 %v145
    %212 = vmatmul.mubr.f32.gmra.mxu0 %v47
    %v213 = vpop.f32.mrf.mxu0
    %v214 = vadd.f32 %v126, %v213
    %v215 = vpop.f32.mrf.mxu0
    %v216 = vadd.f32 %v130, %v215
    %217 = vdwg.mxu0
    %218 = vmatprep.subr.mxu0 %v112
    %219 = vmatpush1.msra.mxu0 %v111
    %220 = vmatprep.subr.mxu0 %v108
    %221 = vmatpush1.msra.mxu0 %v107
    %222 = vmatprep.subr.mxu0 %v104
    %223 = vmatpush1.msra.mxu0 %v103
    %224 = vmatprep.subr.mxu0 %v100
    %225 = vmatpush1.msra.mxu0 %v99
    %226 = vmatprep.subr.mxu0 %v96
    %227 = vmatpush1.msra.mxu0 %v95
    %228 = vmatprep.subr.mxu0 %v92
    %229 = vmatpush1.msra.mxu0 %v91
    %230 = vmatprep.subr.mxu0 %v88
    %231 = vmatpush1.msra.mxu0 %v87
    %232 = vmatprep.subr.mxu0 %v84
    %233 = vmatpush1.msra.mxu0 %v83
    %234 = vmatprep.subr.mxu0 %v80
    %235 = vmatpush1.msra.mxu0 %v79
    %236 = vmatprep.subr.mxu0 %v76
    %237 = vmatpush1.msra.mxu0 %v75
    %238 = vmatprep.subr.mxu0 %v72
    %239 = vmatpush1.msra.mxu0 %v71
    %240 = vmatprep.subr.mxu0 %v68
    %241 = vmatpush1.msra.mxu0 %v67
    %242 = vmatprep.subr.mxu0 %v64
    %243 = vmatpush1.msra.mxu0 %v63
    %244 = vmatprep.subr.mxu0 %v60
    %245 = vmatpush1.msra.mxu0 %v59
    %246 = vmatprep.subr.mxu0 %v56
    %247 = vmatpush1.msra.mxu0 %v55
    %248 = vmatprep.subr.mxu0 %v52
    %249 = vmatpush1.msra.mxu0 %v51
    %250 = vmatprep.subr.mxu0 0.0
    %251 = vmatpush2.msra.mxu0 0.0
    %252 = vmatprep.subr.mxu0 0.0
    %253 = vmatpush2.msra.mxu0 0.0
    %254 = vmatprep.subr.mxu0 0.0
    %255 = vmatpush2.msra.mxu0 0.0
    %256 = vmatprep.subr.mxu0 0.0
    %257 = vmatpush2.msra.mxu0 0.0
    %258 = vmatprep.subr.mxu0 0.0
    %259 = vmatpush2.msra.mxu0 0.0
    %260 = vmatprep.subr.mxu0 0.0
    %261 = vmatpush2.msra.mxu0 0.0
    %262 = vmatprep.subr.mxu0 0.0
    %263 = vmatpush2.msra.mxu0 0.0
    %264 = vmatprep.subr.mxu0 0.0
    %265 = vmatpush2.msra.mxu0 0.0
    %266 = vmatprep.subr.mxu0 0.0
    %267 = vmatpush2.msra.mxu0 0.0
    %268 = vmatprep.subr.mxu0 0.0
    %269 = vmatpush2.msra.mxu0 0.0
    %270 = vmatprep.subr.mxu0 0.0
    %271 = vmatpush2.msra.mxu0 0.0
    %272 = vmatprep.subr.mxu0 0.0
    %273 = vmatpush2.msra.mxu0 0.0
    %274 = vmatprep.subr.mxu0 0.0
    %275 = vmatpush2.msra.mxu0 0.0
    %276 = vmatprep.subr.mxu0 0.0
    %277 = vmatpush2.msra.mxu0 0.0
    %278 = vmatprep.subr.mxu0 %v120
    %279 = vmatpush2.msra.mxu0 %v119
    %280 = vmatprep.subr.mxu0 %v116
    %281 = vmatpush2.msra.mxu0 %v115
    %282 = vmatprep.mubr.f32.mxu0 %v145
    %283 = vmatmul.mubr.f32.gmra.mxu0 %v47
    %v284 = vpop.f32.mrf.mxu0
    %v285 = vadd.f32 %v134, %v284
    %v286 = vpop.f32.mrf.mxu0
    %v287 = vadd.f32 %v138, %v286
    %288 = vdwg.mxu0
    %v289 = vxor.u32 %v214, 2147483648
    %v290 = vmul.f32 %v289, 1.442695
    %v291 = vpow.pop %v290
    %v292 = vadd.f32 %v291, 1.0
    %v293 = vrcp.pop %v292
    %v294 = vmul.f32 1.0, %v293
    %v295 = vxor.u32 %v216, 2147483648
    %v296 = vmul.f32 %v295, 1.442695
    %v297 = vpow.pop %v296
    %v298 = vadd.f32 %v297, 1.0
    %v299 = vrcp.pop %v298
    %v300 = vmul.f32 1.0, %v299
    %v301 = vtanh.pop %v285
    %v302 = vxor.u32 %v287, 2147483648
    %v303 = vmul.f32 %v302, 1.442695
    %v304 = vpow.pop %v303
    %v305 = vadd.f32 %v304, 1.0
    %v306 = vrcp.pop %v305
    %v307 = vmul.f32 1.0, %v306
    %v308 = vld [vmem:[#allocation5] sm:$0xff]
    %v309 = vmul.f32 %v300, %v308
    %v310 = vmul.f32 %v294, %v301
    %v311 = vadd.f32 %v309, %v310
    %v312 = vtanh.pop %v311
    %v313 = vmul.f32 %v307, %v312
    %314 = vst [vmem:[#allocation7] sm:$0xff] %v313
    %315 = vst [vmem:[#allocation8] sm:$0xff] %v311
    // Predicated region
    $region26: #{tpu_custom_call.1} parent=1 // pred_check
      _
    $region27: #{tpu_custom_call.1} parent=1 // pred_check_branch
      %317 = sbr.rel (0) target = $region29
    $region28: #{tpu_custom_call.1} parent=1 // pred_region
      %s319 = ssub.s32 128, 128
      %320 = vsyncadd [#allocation4], %s319
      %s322 = sshll.u32 [#allocation7], 4
      %s323 = int_to_ptr.vmem [resolvable:$true] %s322
      %325 = dma.vmem_to_hbm [thread:$0]  %s323, 128, %s4, [#allocation4]
    $region29: #{tpu_custom_call.1} parent=1 // pred_fallthru
      _
    // Predicated region
    $region30: #{tpu_custom_call.1} parent=1 // pred_check
      _
    $region31: #{tpu_custom_call.1} parent=1 // pred_check_branch
      %327 = sbr.rel (0) target = $region33
    $region32: #{tpu_custom_call.1} parent=1 // pred_region
      %s329 = ssub.s32 128, 128
      %330 = vsyncadd [#allocation9], %s329
      %s332 = sshll.u32 [#allocation8], 4
      %s333 = int_to_ptr.vmem [resolvable:$true] %s332
      %335 = dma.vmem_to_hbm [thread:$0]  %s333, 128, %s5, [#allocation9]
    $region33: #{tpu_custom_call.1} parent=1 // pred_fallthru
      _
    // Predicated region
    $region34: #{tpu_custom_call.1} parent=1 // pred_check
      _
    $region35: #{tpu_custom_call.1} parent=1 // pred_check_branch
      %337 = sbr.rel (0) target = $region37
    $region36: #{tpu_custom_call.1} parent=1 // pred_region
      %338 = dma.done [#allocation4], 128
    $region37: #{tpu_custom_call.1} parent=1 // pred_fallthru
      _
    // Predicated region
    $region38: #{tpu_custom_call.1} parent=1 // pred_check
      _
    $region39: #{tpu_custom_call.1} parent=1 // pred_check_branch
      %340 = sbr.rel (0) target = $region41
    $region40: #{tpu_custom_call.1} parent=1 // pred_region
      %341 = dma.done [#allocation9], 128
    $region41: #{tpu_custom_call.1} parent=1 // pred_fallthru
      _
    %342 = vsyncpa [#allocation3], 1
    %343 = vsyncpa [#allocation6], 1
    %344 = vsyncpa [#allocation4], 1
    %345 = vsyncpa [#allocation9], 1

</llo_original>
